<compile_context>
chip_gen: v6e
topology: v6e:2x2x1
jax: 0.10.0
libtpu: 0.0.40
codegen_flags: <defaults>
</compile_context>

<pallas_src>
import jax
import jax.numpy as jnp
from jax.experimental import pallas as pl
from jax.experimental.pallas import tpu as pltpu

NUM_LAYERS = 6
EPS = 1e-12  # torch.nn.functional.normalize default eps


def _fused_mlp_norm_kernel(x_ref, clip_ref, w_ref, b_ref,
                           labse_out_ref, clip_out_ref):
    """Per-batch-tile: 6-layer MLP chain (+ residuals) + L2 norm, fused CLIP L2 norm.

    x_ref:        [TB, H]       LaBSE embedding tile
    clip_ref:     [TB, Hc]      CLIP embedding tile
    w_ref:        [6, H, H]     stacked pre-transposed weights (in, out), bf16/f32
    b_ref:        [6, 1, H]     stacked biases, f32
    labse_out_ref:[TB, H]       normalized transformed LaBSE embedding
    clip_out_ref: [TB, Hc]      normalized CLIP embedding
    """
    w_dtype = w_ref.dtype
    h = x_ref[...].astype(jnp.float32)

    # Static 6-iteration unroll: do NOT convert to a dynamic loop over layers.
    for idx in range(NUM_LAYERS):
        y = jnp.dot(h.astype(w_dtype), w_ref[idx],
                    preferred_element_type=jnp.float32) + b_ref[idx]
        if idx < 2:            # 'hybrid': first two layers replace
            h = y
        else:                  # remaining four layers are residual
            h = h + y

    sumsq = jnp.sum(h * h, axis=-1, keepdims=True)
    inv = jax.lax.rsqrt(jnp.maximum(sumsq, EPS * EPS))   # EUP rsqrt; == 1/max(||h||, eps)
    labse_out_ref[...] = (h * inv).astype(labse_out_ref.dtype)

    c = clip_ref[...].astype(jnp.float32)
    c_sumsq = jnp.sum(c * c, axis=-1, keepdims=True)
    c_inv = jax.lax.rsqrt(jnp.maximum(c_sumsq, EPS * EPS))
    clip_out_ref[...] = (c * c_inv).astype(clip_out_ref.dtype)


def labse_clip_forward(inputs, w_t, b, *, tile_b=256):
    """Pallas implementation of labse_clip.forward (emb_method == 'hybrid').

    inputs: dict with 'eng_labse_emb' [B,H], 'eng_clip_emb' [B,Hc],
            'non_eng_labse_emb' [B,H]
    w_t:    [6, H, H] pre-transposed linear weights (in, out)  (bf16 or f32)
    b:      [6, 1, H] biases (f32)
    """
    eng_labse = inputs['eng_labse_emb']
    eng_clip = inputs['eng_clip_emb']
    B, H = eng_labse.shape
    Hc = eng_clip.shape[1]

    tile_b = min(tile_b, B)
    if tile_b < B:
        tile_b = max(8, (tile_b // 8) * 8)   # sublane-aligned batch tile
    grid = (pl.cdiv(B, tile_b),)

    # Explicit VMEM budget: resident weights + biases + double-buffered
    # in/out activation tiles + working headroom. Cap at 64 MiB (v7x physical).
    w_itemsize = jnp.dtype(w_t.dtype).itemsize
    est = (NUM_LAYERS * H * H * w_itemsize            # resident weights
           + NUM_LAYERS * H * 4                       # biases
           + 2 * 2 * tile_b * (H + Hc) * 4            # dbl-buffered in + out tiles
           + 4 * tile_b * H * 4)                      # f32 working set
    vmem_limit = min(max(int(est * 1.5), 16 * 1024 * 1024), 64 * 1024 * 1024)

    new_labse, clip_norm = pl.pallas_call(
        _fused_mlp_norm_kernel,
        out_shape=(jax.ShapeDtypeStruct((B, H), jnp.float32),
                   jax.ShapeDtypeStruct((B, Hc), jnp.float32)),
        grid=grid,
        in_specs=[
            pl.BlockSpec((tile_b, H), lambda i: (i, 0)),           # streamed
            pl.BlockSpec((tile_b, Hc), lambda i: (i, 0)),          # streamed
            pl.BlockSpec((NUM_LAYERS, H, H), lambda i: (0, 0, 0)),  # resident
            pl.BlockSpec((NUM_LAYERS, 1, H), lambda i: (0, 0, 0)),  # resident
        ],
        out_specs=(
            pl.BlockSpec((tile_b, H), lambda i: (i, 0)),
            pl.BlockSpec((tile_b, Hc), lambda i: (i, 0)),
        ),
        compiler_params=pltpu.CompilerParams(
            dimension_semantics=("parallel",),   # megacore-shard batch on v7x
            vmem_limit_bytes=vmem_limit,
        ),
    )(eng_labse, eng_clip, w_t, b)

    return {
        'non_eng_labse_emb': inputs['non_eng_labse_emb'],
        'new_eng_labse_emb': new_labse,
        'org_eng_labse_emb': eng_labse,
        'eng_clip_emb': clip_norm,
    }


def _reference_forward(inputs, w_t, b):
    """Pure-JAX reference with the same dtype policy (bf16 matmul inputs, f32 acc)."""
    wd = w_t.dtype
    h = inputs['eng_labse_emb'].astype(jnp.float32)
    for idx in range(NUM_LAYERS):
        y = jnp.dot(h.astype(wd), w_t[idx],
                    preferred_element_type=jnp.float32) + b[idx]
        h = y if idx < 2 else h + y
    h = h * jax.lax.rsqrt(jnp.maximum(jnp.sum(h * h, -1, keepdims=True), EPS * EPS))
    c = inputs['eng_clip_emb'].astype(jnp.float32)
    c = c * jax.lax.rsqrt(jnp.maximum(jnp.sum(c * c, -1, keepdims=True), EPS * EPS))
    return h, c


if __name__ == "__main__":
    batch, hdim, clip_dim = 16, 128, 128   # small demo shapes; tile_b=8 -> grid of 2
    tile_b = 8

    key = jax.random.PRNGKey(0)
    k_w, k_b, k_eng, k_non, k_clip = jax.random.split(key, 5)

    # torch.nn.Linear default init (uniform +-1/sqrt(hdim)), stored [layer, out, in]
    # like PyTorch, then transposed to [layer, in, out] and cast to bf16 for the MXU.
    bound = 1.0 / (hdim ** 0.5)
    w_torch_layout = jax.random.uniform(
        k_w, (NUM_LAYERS, hdim, hdim), jnp.float32, -bound, bound)
    w_t = jnp.swapaxes(w_torch_layout, 1, 2).astype(jnp.bfloat16)
    b = jax.random.uniform(
        k_b, (NUM_LAYERS, 1, hdim), jnp.float32, -bound, bound)

    inputs = {
        'eng_labse_emb': jax.random.normal(k_eng, (batch, hdim), jnp.float32),
        'non_eng_labse_emb': jax.random.normal(k_non, (batch, hdim), jnp.float32),
        'eng_clip_emb': jax.random.normal(k_clip, (batch, clip_dim), jnp.float32),
    }

    out = labse_clip_forward(inputs, w_t, b, tile_b=tile_b)
    jax.block_until_ready(out)

    ref_new, ref_clip = _reference_forward(inputs, w_t, b)
    assert jnp.allclose(out['new_eng_labse_emb'], ref_new, atol=1e-4, rtol=1e-3), (
        float(jnp.max(jnp.abs(out['new_eng_labse_emb'] - ref_new))))
    assert jnp.allclose(out['eng_clip_emb'], ref_clip, atol=1e-5, rtol=1e-5)
    assert out['org_eng_labse_emb'].shape == (batch, hdim)
    assert out['non_eng_labse_emb'].shape == (batch, hdim)

    print("KERNEL_OK")
</pallas_src>

<mosaic_0001>
module attributes {stable_mosaic.version = 11 : i64} {
  func.func @_fused_mlp_norm_kernel(%arg0: i32, %arg1: memref<8x128xf32, #tpu.memory_space<vmem>>, %arg2: memref<8x128xf32, #tpu.memory_space<vmem>>, %arg3: memref<6x128x128xbf16, #tpu.memory_space<vmem>>, %arg4: memref<6x1x128xf32, #tpu.memory_space<vmem>>, %arg5: memref<8x128xf32, #tpu.memory_space<vmem>>, %arg6: memref<8x128xf32, #tpu.memory_space<vmem>>) attributes {dimension_semantics = [#tpu.dimension_semantics<parallel>], iteration_bounds = array<i64: 2>, scalar_prefetch = 0 : i64, scratch_operands = 0 : i64, tpu.core_type = #tpu.core_type<tc>, window_params = [{transform_indices = @transform_0, window_bounds = array<i64: 8, 128>}, {transform_indices = @transform_1, window_bounds = array<i64: 8, 128>}, {pipeline_mode = #tpu.pipeline_mode<synchronous>, transform_indices = @transform_2, window_bounds = array<i64: 6, 128, 128>}, {pipeline_mode = #tpu.pipeline_mode<synchronous>, transform_indices = @transform_3, window_bounds = array<i64: 6, 1, 128>}, {transform_indices = @transform_4, window_bounds = array<i64: 8, 128>}, {transform_indices = @transform_5, window_bounds = array<i64: 8, 128>}]} {
    %c0 = arith.constant 0 : index
    %c0_0 = arith.constant 0 : index
    %0 = vector.load %arg1[%c0, %c0_0] : memref<8x128xf32, #tpu.memory_space<vmem>>, vector<8x128xf32>
    %1 = arith.truncf %0 : vector<8x128xf32> to vector<8x128xbf16>
    %c0_1 = arith.constant 0 : index
    %c0_2 = arith.constant 0 : index
    %c0_3 = arith.constant 0 : index
    %2 = vector.load %arg3[%c0_1, %c0_2, %c0_3] : memref<6x128x128xbf16, #tpu.memory_space<vmem>>, vector<1x128x128xbf16>
    %3 = vector.shape_cast %2 : vector<1x128x128xbf16> to vector<128x128xbf16>
    %cst = arith.constant dense<0.000000e+00> : vector<8x128xf32>
    %4 = tpu.matmul %1, %3, %cst {dimension_numbers = #tpu.dot_dimension_numbers<[1], [0], [0], [1], [0, 0, 1, 1], [], []>} : vector<8x128xbf16>, vector<128x128xbf16>, vector<8x128xf32> -> vector<8x128xf32>
    %c0_4 = arith.constant 0 : index
    %c0_5 = arith.constant 0 : index
    %c0_6 = arith.constant 0 : index
    %5 = vector.load %arg4[%c0_4, %c0_5, %c0_6] : memref<6x1x128xf32, #tpu.memory_space<vmem>>, vector<1x1x128xf32>
    %6 = vector.shape_cast %5 : vector<1x1x128xf32> to vector<1x128xf32>
    %7 = vector.broadcast %6 : vector<1x128xf32> to vector<8x128xf32>
    %8 = arith.addf %4, %7 : vector<8x128xf32>
    %9 = arith.truncf %8 : vector<8x128xf32> to vector<8x128xbf16>
    %c1 = arith.constant 1 : index
    %c0_7 = arith.constant 0 : index
    %c0_8 = arith.constant 0 : index
    %10 = vector.load %arg3[%c1, %c0_7, %c0_8] : memref<6x128x128xbf16, #tpu.memory_space<vmem>>, vector<1x128x128xbf16>
    %11 = vector.shape_cast %10 : vector<1x128x128xbf16> to vector<128x128xbf16>
    %cst_9 = arith.constant dense<0.000000e+00> : vector<8x128xf32>
    %12 = tpu.matmul %9, %11, %cst_9 {dimension_numbers = #tpu.dot_dimension_numbers<[1], [0], [0], [1], [0, 0, 1, 1], [], []>} : vector<8x128xbf16>, vector<128x128xbf16>, vector<8x128xf32> -> vector<8x128xf32>
    %c1_10 = arith.constant 1 : index
    %c0_11 = arith.constant 0 : index
    %c0_12 = arith.constant 0 : index
    %13 = vector.load %arg4[%c1_10, %c0_11, %c0_12] : memref<6x1x128xf32, #tpu.memory_space<vmem>>, vector<1x1x128xf32>
    %14 = vector.shape_cast %13 : vector<1x1x128xf32> to vector<1x128xf32>
    %15 = vector.broadcast %14 : vector<1x128xf32> to vector<8x128xf32>
    %16 = arith.addf %12, %15 : vector<8x128xf32>
    %17 = arith.truncf %16 : vector<8x128xf32> to vector<8x128xbf16>
    %c2 = arith.constant 2 : index
    %c0_13 = arith.constant 0 : index
    %c0_14 = arith.constant 0 : index
    %18 = vector.load %arg3[%c2, %c0_13, %c0_14] : memref<6x128x128xbf16, #tpu.memory_space<vmem>>, vector<1x128x128xbf16>
    %19 = vector.shape_cast %18 : vector<1x128x128xbf16> to vector<128x128xbf16>
    %cst_15 = arith.constant dense<0.000000e+00> : vector<8x128xf32>
    %20 = tpu.matmul %17, %19, %cst_15 {dimension_numbers = #tpu.dot_dimension_numbers<[1], [0], [0], [1], [0, 0, 1, 1], [], []>} : vector<8x128xbf16>, vector<128x128xbf16>, vector<8x128xf32> -> vector<8x128xf32>
    %c2_16 = arith.constant 2 : index
    %c0_17 = arith.constant 0 : index
    %c0_18 = arith.constant 0 : index
    %21 = vector.load %arg4[%c2_16, %c0_17, %c0_18] : memref<6x1x128xf32, #tpu.memory_space<vmem>>, vector<1x1x128xf32>
    %22 = vector.shape_cast %21 : vector<1x1x128xf32> to vector<1x128xf32>
    %23 = vector.broadcast %22 : vector<1x128xf32> to vector<8x128xf32>
    %24 = arith.addf %20, %23 : vector<8x128xf32>
    %25 = arith.addf %16, %24 : vector<8x128xf32>
    %26 = arith.truncf %25 : vector<8x128xf32> to vector<8x128xbf16>
    %c3 = arith.constant 3 : index
    %c0_19 = arith.constant 0 : index
    %c0_20 = arith.constant 0 : index
    %27 = vector.load %arg3[%c3, %c0_19, %c0_20] : memref<6x128x128xbf16, #tpu.memory_space<vmem>>, vector<1x128x128xbf16>
    %28 = vector.shape_cast %27 : vector<1x128x128xbf16> to vector<128x128xbf16>
    %cst_21 = arith.constant dense<0.000000e+00> : vector<8x128xf32>
    %29 = tpu.matmul %26, %28, %cst_21 {dimension_numbers = #tpu.dot_dimension_numbers<[1], [0], [0], [1], [0, 0, 1, 1], [], []>} : vector<8x128xbf16>, vector<128x128xbf16>, vector<8x128xf32> -> vector<8x128xf32>
    %c3_22 = arith.constant 3 : index
    %c0_23 = arith.constant 0 : index
    %c0_24 = arith.constant 0 : index
    %30 = vector.load %arg4[%c3_22, %c0_23, %c0_24] : memref<6x1x128xf32, #tpu.memory_space<vmem>>, vector<1x1x128xf32>
    %31 = vector.shape_cast %30 : vector<1x1x128xf32> to vector<1x128xf32>
    %32 = vector.broadcast %31 : vector<1x128xf32> to vector<8x128xf32>
    %33 = arith.addf %29, %32 : vector<8x128xf32>
    %34 = arith.addf %25, %33 : vector<8x128xf32>
    %35 = arith.truncf %34 : vector<8x128xf32> to vector<8x128xbf16>
    %c4 = arith.constant 4 : index
    %c0_25 = arith.constant 0 : index
    %c0_26 = arith.constant 0 : index
    %36 = vector.load %arg3[%c4, %c0_25, %c0_26] : memref<6x128x128xbf16, #tpu.memory_space<vmem>>, vector<1x128x128xbf16>
    %37 = vector.shape_cast %36 : vector<1x128x128xbf16> to vector<128x128xbf16>
    %cst_27 = arith.constant dense<0.000000e+00> : vector<8x128xf32>
    %38 = tpu.matmul %35, %37, %cst_27 {dimension_numbers = #tpu.dot_dimension_numbers<[1], [0], [0], [1], [0, 0, 1, 1], [], []>} : vector<8x128xbf16>, vector<128x128xbf16>, vector<8x128xf32> -> vector<8x128xf32>
    %c4_28 = arith.constant 4 : index
    %c0_29 = arith.constant 0 : index
    %c0_30 = arith.constant 0 : index
    %39 = vector.load %arg4[%c4_28, %c0_29, %c0_30] : memref<6x1x128xf32, #tpu.memory_space<vmem>>, vector<1x1x128xf32>
    %40 = vector.shape_cast %39 : vector<1x1x128xf32> to vector<1x128xf32>
    %41 = vector.broadcast %40 : vector<1x128xf32> to vector<8x128xf32>
    %42 = arith.addf %38, %41 : vector<8x128xf32>
    %43 = arith.addf %34, %42 : vector<8x128xf32>
    %44 = arith.truncf %43 : vector<8x128xf32> to vector<8x128xbf16>
    %c5 = arith.constant 5 : index
    %c0_31 = arith.constant 0 : index
    %c0_32 = arith.constant 0 : index
    %45 = vector.load %arg3[%c5, %c0_31, %c0_32] : memref<6x128x128xbf16, #tpu.memory_space<vmem>>, vector<1x128x128xbf16>
    %46 = vector.shape_cast %45 : vector<1x128x128xbf16> to vector<128x128xbf16>
    %cst_33 = arith.constant dense<0.000000e+00> : vector<8x128xf32>
    %47 = tpu.matmul %44, %46, %cst_33 {dimension_numbers = #tpu.dot_dimension_numbers<[1], [0], [0], [1], [0, 0, 1, 1], [], []>} : vector<8x128xbf16>, vector<128x128xbf16>, vector<8x128xf32> -> vector<8x128xf32>
    %c5_34 = arith.constant 5 : index
    %c0_35 = arith.constant 0 : index
    %c0_36 = arith.constant 0 : index
    %48 = vector.load %arg4[%c5_34, %c0_35, %c0_36] : memref<6x1x128xf32, #tpu.memory_space<vmem>>, vector<1x1x128xf32>
    %49 = vector.shape_cast %48 : vector<1x1x128xf32> to vector<1x128xf32>
    %50 = vector.broadcast %49 : vector<1x128xf32> to vector<8x128xf32>
    %51 = arith.addf %47, %50 : vector<8x128xf32>
    %52 = arith.addf %43, %51 : vector<8x128xf32>
    %53 = arith.mulf %52, %52 : vector<8x128xf32>
    %cst_37 = arith.constant dense<0.000000e+00> : vector<8xf32>
    %54 = vector.multi_reduction <add>, %53, %cst_37 [1] : vector<8x128xf32> to vector<8xf32>
    %55 = vector.shape_cast %54 : vector<8xf32> to vector<8x1xf32>
    %cst_38 = arith.constant 1.000000e-24 : f32
    %56 = vector.broadcast %cst_38 : f32 to vector<8x1xf32>
    %57 = arith.maximumf %55, %56 : vector<8x1xf32>
    %58 = math.rsqrt %57 : vector<8x1xf32>
    %59 = vector.broadcast %58 : vector<8x1xf32> to vector<8x128xf32>
    %60 = arith.mulf %52, %59 : vector<8x128xf32>
    %c0_39 = arith.constant 0 : index
    %c0_40 = arith.constant 0 : index
    %61 = vector.load %arg5[%c0_39, %c0_40] : memref<8x128xf32, #tpu.memory_space<vmem>>, vector<8x128xf32>
    tpu.vector_store %arg5[%c0_39, %c0_40], %60 {strides = array<i32>} : memref<8x128xf32, #tpu.memory_space<vmem>>, vector<8x128xf32>,
    %c0_41 = arith.constant 0 : index
    %c0_42 = arith.constant 0 : index
    %62 = vector.load %arg2[%c0_41, %c0_42] : memref<8x128xf32, #tpu.memory_space<vmem>>, vector<8x128xf32>
    %63 = arith.mulf %62, %62 : vector<8x128xf32>
    %cst_43 = arith.constant dense<0.000000e+00> : vector<8xf32>
    %64 = vector.multi_reduction <add>, %63, %cst_43 [1] : vector<8x128xf32> to vector<8xf32>
    %65 = vector.shape_cast %64 : vector<8xf32> to vector<8x1xf32>
    %cst_44 = arith.constant 1.000000e-24 : f32
    %66 = vector.broadcast %cst_44 : f32 to vector<8x1xf32>
    %67 = arith.maximumf %65, %66 : vector<8x1xf32>
    %68 = math.rsqrt %67 : vector<8x1xf32>
    %69 = vector.broadcast %68 : vector<8x1xf32> to vector<8x128xf32>
    %70 = arith.mulf %62, %69 : vector<8x128xf32>
    %c0_45 = arith.constant 0 : index
    %c0_46 = arith.constant 0 : index
    %71 = vector.load %arg6[%c0_45, %c0_46] : memref<8x128xf32, #tpu.memory_space<vmem>>, vector<8x128xf32>
    tpu.vector_store %arg6[%c0_45, %c0_46], %70 {strides = array<i32>} : memref<8x128xf32, #tpu.memory_space<vmem>>, vector<8x128xf32>,
    return
  }
  func.func @transform_0(%arg0: i32) -> (i32, i32) {
    %c0_i32 = arith.constant 0 : i32
    %c0_i32_0 = arith.constant 0 : i32
    return %arg0, %c0_i32 : i32, i32
  }
  func.func @transform_1(%arg0: i32) -> (i32, i32) {
    %c0_i32 = arith.constant 0 : i32
    %c0_i32_0 = arith.constant 0 : i32
    return %arg0, %c0_i32 : i32, i32
  }
  func.func @transform_2(%arg0: i32) -> (i32, i32, i32) {
    %c0_i32 = arith.constant 0 : i32
    %c0_i32_0 = arith.constant 0 : i32
    %c0_i32_1 = arith.constant 0 : i32
    %c0_i32_2 = arith.constant 0 : i32
    return %c0_i32, %c0_i32_0, %c0_i32_1 : i32, i32, i32
  }
  func.func @transform_3(%arg0: i32) -> (i32, i32, i32) {
    %c0_i32 = arith.constant 0 : i32
    %c0_i32_0 = arith.constant 0 : i32
    %c0_i32_1 = arith.constant 0 : i32
    %c0_i32_2 = arith.constant 0 : i32
    return %c0_i32, %c0_i32_0, %c0_i32_1 : i32, i32, i32
  }
  func.func @transform_4(%arg0: i32) -> (i32, i32) {
    %c0_i32 = arith.constant 0 : i32
    %c0_i32_0 = arith.constant 0 : i32
    return %arg0, %c0_i32 : i32, i32
  }
  func.func @transform_5(%arg0: i32) -> (i32, i32) {
    %c0_i32 = arith.constant 0 : i32
    %c0_i32_0 = arith.constant 0 : i32
    return %arg0, %c0_i32 : i32, i32
  }
}

</mosaic_0001>

<llo_original>
// kernel: tpu_custom_call.1
$region0: #{tpu_custom_call.1}
  #allocation0 [shape = 'u32[]', space=smem, size = 0x4, offset = 0x4, fixed_abs, tag = 'smem constant byte address 0x4 - core index']
  #allocation1 [shape = 'u32[144,128]{1,0:T(1,128)}', space=vmem, size = 0x12000, scoped, tag = 'internal scratch']
  %s0 = inlined_call_operand.hbm [shape: f32[16,128], index: 0, kind: input, shape index: {}]
  %s1 = inlined_call_operand.hbm [shape: f32[16,128], index: 1, kind: input, shape index: {}]
  %s2 = inlined_call_operand.hbm [shape: bf16[6,128,128], index: 2, kind: input, shape index: {}]
  %s3 = inlined_call_operand.hbm [shape: f32[6,1,128], index: 3, kind: input, shape index: {}]
  %s4 = inlined_call_operand.hbm [shape: f32[16,128], index: 4, kind: output, shape index: {0}]
  %s5 = inlined_call_operand.hbm [shape: f32[16,128], index: 5, kind: output, shape index: {1}]
  %6 = xla_tuple %s4, %s5
  %s7 = sld [smem:[#allocation0]]
  $region73: #{tpu_custom_call.1} parent=0
    _
  %s9 = ssub.s32 1, %s7
  %s10 = scalar_select 0, %s9, %s7
  $region1: #{tpu_custom_call.1} parent=0
    #allocation2 [shape = 'u8[8192]{0}', space=vmem, size = 0x2000, scoped, tag = 'input window, operand 0']
    #allocation3 [shape = 's32[2]{0}', space=sflag, size = 0x8, scoped, tag = 'scoped memory for tpu_custom_call.1']
    #allocation4 [shape = 's32[2]{0}', space=sflag, size = 0x8, scoped, tag = 'scoped memory for tpu_custom_call.1']
    #allocation5 [shape = 'u8[8192]{0}', space=vmem, size = 0x2000, scoped, tag = 'input window, operand 1']
    #allocation6 [shape = 's32[2]{0}', space=sflag, size = 0x8, scoped, tag = 'scoped memory for tpu_custom_call.1']
    #allocation7 [shape = 'u8[196608]{0}', space=vmem, size = 0x30000, scoped, tag = 'input window, operand 2, single buffered']
    #allocation8 [shape = 'u8[3072]{0}', space=vmem, size = 0xc00, scoped, tag = 'input window, operand 3, single buffered']
    #allocation9 [shape = 's32[1]{0}', space=sflag, size = 0x4, scoped, tag = 'scoped memory for tpu_custom_call.1']
    #allocation10 [shape = 'u8[8192]{0}', space=vmem, size = 0x2000, scoped, tag = 'output window, operand 0']
    #allocation11 [shape = 'u8[8192]{0}', space=vmem, size = 0x2000, scoped, tag = 'output window, operand 1']
    #allocation12 [shape = 's32[2]{0}', space=sflag, size = 0x8, scoped, tag = 'scoped memory for tpu_custom_call.1']
    %11 = vsyncpa [#allocation3], 0
    %s12 = scalar_lea.sflag [#allocation3], 1
    %13 = vsyncpa %s12, 0
    %14 = vsyncpa [#allocation6], 0
    %s15 = scalar_lea.sflag [#allocation6], 1
    %16 = vsyncpa %s15, 0
    %17 = vsyncpa [#allocation9], 0
    %18 = vsyncpa [#allocation4], 0
    %s19 = scalar_lea.sflag [#allocation4], 1
    %20 = vsyncpa %s19, 0
    %21 = vsyncpa [#allocation12], 0
    %s22 = scalar_lea.sflag [#allocation12], 1
    %23 = vsyncpa %s22, 0
    loop: start=0, step=1, limit=4
    $region2: #{tpu_custom_call.1} parent=1 // loop_pre_header
      _
    $region3: #{tpu_custom_call.1} parent=1 // loop_header
      %s25 = sphi 0, %s29
      %p26 = scmp.ge.s32.totalorder %s25, 4
      %s35 = sphi 0, %s37
      %s38 = sphi 0, %s35
      %s39 = sphi 0, %s38
      %s55 = sphi 0, %s39
      %s61 = sphi 0, %s63
      %s64 = sphi 0, %s61
      %s65 = sphi 0, %s64
      %s81 = sphi 0, %s65
      %s85 = sphi 0, %s85
      %s87 = sphi 0, %s85
      %s88 = sphi 0, %s87
      %s102 = sphi 0, %s88
      %s106 = sphi 0, %s106
      %s108 = sphi 0, %s106
      %s109 = sphi 0, %s108
      %s123 = sphi 0, %s109
      %s129 = sphi 0, %s131
      %s132 = sphi 0, %s129
      %s133 = sphi 0, %s132
      %s149 = sphi 0, %s133
      %s155 = sphi 0, %s157
      %s158 = sphi 0, %s155
      %s159 = sphi 0, %s158
      %s175 = sphi 0, %s159
    $region4: #{tpu_custom_call.1} parent=1 // loop_header_branch
      %28 = sbr.rel (%p26) target = $region8
    $region5: #{tpu_custom_call.1} parent=1 // loop_body
      %s30 = ssub.s32 %s25, 1
      %s31 = ssub.s32 %s25, 2
      %s32 = sadd.s32 %s25, 1
      %s33 = ssub.s32 %s25, %s32
      %p34 = scmp.eq.s32.totalorder %s33, 0
      %s36 = sadd.s32 %s35, 1
      %s37 = scalar_select %p34, %s35, %s36
      %p40 = pneg %p34
      %p41 = scmp.eq.s32.totalorder %s25, 1
      %p42 = por %p40, %p41
      %p43 = scmp.ne.s32.totalorder %s35, %s38
      %p44 = scmp.eq.s32.totalorder %s25, 0
      %p45 = por %p43, %p44
      %p46 = scmp.ne.s32.totalorder %s35, %s38
      %p47 = scmp.eq.s32.totalorder %s30, 1
      %p48 = por %p46, %p47
      %p49 = scmp.ne.s32.totalorder %s38, %s39
      %p50 = scmp.eq.s32.totalorder %s30, 0
      %p51 = por %p49, %p50
      %p52 = scmp.ne.s32.totalorder %s38, %s39
      %p53 = scmp.eq.s32.totalorder %s31, 1
      %p54 = por %p52, %p53
      %p56 = scmp.ne.s32.totalorder %s39, %s55
      %p57 = scmp.eq.s32.totalorder %s31, 0
      %p58 = por %p56, %p57
      %s59 = ssub.s32 %s25, %s32
      %p60 = scmp.eq.s32.totalorder %s59, 0
      %s62 = sadd.s32 %s61, 1
      %s63 = scalar_select %p60, %s61, %s62
      %p66 = pneg %p60
      %p67 = scmp.eq.s32.totalorder %s25, 1
      %p68 = por %p66, %p67
      %p69 = scmp.ne.s32.totalorder %s61, %s64
      %p70 = scmp.eq.s32.totalorder %s25, 0
      %p71 = por %p69, %p70
      %p72 = scmp.ne.s32.totalorder %s61, %s64
      %p73 = scmp.eq.s32.totalorder %s30, 1
      %p74 = por %p72, %p73
      %p75 = scmp.ne.s32.totalorder %s64, %s65
      %p76 = scmp.eq.s32.totalorder %s30, 0
      %p77 = por %p75, %p76
      %p78 = scmp.ne.s32.totalorder %s64, %s65
      %p79 = scmp.eq.s32.totalorder %s31, 1
      %p80 = por %p78, %p79
      %p82 = scmp.ne.s32.totalorder %s65, %s81
      %p83 = scmp.eq.s32.totalorder %s31, 0
      %p84 = por %p82, %p83
      %s86 = sadd.s32 %s85, 1
      %p89 = scmp.eq.s32.totalorder %s25, 1
      %p90 = scmp.ne.s32.totalorder %s85, %s87
      %p91 = scmp.eq.s32.totalorder %s25, 0
      %p92 = por %p90, %p91
      %p93 = scmp.ne.s32.totalorder %s85, %s87
      %p94 = scmp.eq.s32.totalorder %s30, 1
      %p95 = por %p93, %p94
      %p96 = scmp.ne.s32.totalorder %s87, %s88
      %p97 = scmp.eq.s32.totalorder %s30, 0
      %p98 = por %p96, %p97
      %p99 = scmp.ne.s32.totalorder %s87, %s88
      %p100 = scmp.eq.s32.totalorder %s31, 1
      %p101 = por %p99, %p100
      %p103 = scmp.ne.s32.totalorder %s88, %s102
      %p104 = scmp.eq.s32.totalorder %s31, 0
      %p105 = por %p103, %p104
      %s107 = sadd.s32 %s106, 1
      %p110 = scmp.eq.s32.totalorder %s25, 1
      %p111 = scmp.ne.s32.totalorder %s106, %s108
      %p112 = scmp.eq.s32.totalorder %s25, 0
      %p113 = por %p111, %p112
      %p114 = scmp.ne.s32.totalorder %s106, %s108
      %p115 = scmp.eq.s32.totalorder %s30, 1
      %p116 = por %p114, %p115
      %p117 = scmp.ne.s32.totalorder %s108, %s109
      %p118 = scmp.eq.s32.totalorder %s30, 0
      %p119 = por %p117, %p118
      %p120 = scmp.ne.s32.totalorder %s108, %s109
      %p121 = scmp.eq.s32.totalorder %s31, 1
      %p122 = por %p120, %p121
      %p124 = scmp.ne.s32.totalorder %s109, %s123
      %p125 = scmp.eq.s32.totalorder %s31, 0
      %p126 = por %p124, %p125
      %s127 = ssub.s32 %s25, %s32
      %p128 = scmp.eq.s32.totalorder %s127, 0
      %s130 = sadd.s32 %s129, 1
      %s131 = scalar_select %p128, %s129, %s130
      %p134 = pneg %p128
      %p135 = scmp.eq.s32.totalorder %s25, 1
      %p136 = por %p134, %p135
      %p137 = scmp.ne.s32.totalorder %s129, %s132
      %p138 = scmp.eq.s32.totalorder %s25, 0
      %p139 = por %p137, %p138
      %p140 = scmp.ne.s32.totalorder %s129, %s132
      %p141 = scmp.eq.s32.totalorder %s30, 1
      %p142 = por %p140, %p141
      %p143 = scmp.ne.s32.totalorder %s132, %s133
      %p144 = scmp.eq.s32.totalorder %s30, 0
      %p145 = por %p143, %p144
      %p146 = scmp.ne.s32.totalorder %s132, %s133
      %p147 = scmp.eq.s32.totalorder %s31, 1
      %p148 = por %p146, %p147
      %p150 = scmp.ne.s32.totalorder %s133, %s149
      %p151 = scmp.eq.s32.totalorder %s31, 0
      %p152 = por %p150, %p151
      %s153 = ssub.s32 %s25, %s32
      %p154 = scmp.eq.s32.totalorder %s153, 0
      %s156 = sadd.s32 %s155, 1
      %s157 = scalar_select %p154, %s155, %s156
      %p160 = pneg %p154
      %p161 = scmp.eq.s32.totalorder %s25, 1
      %p162 = por %p160, %p161
      %p163 = scmp.ne.s32.totalorder %s155, %s158
      %p164 = scmp.eq.s32.totalorder %s25, 0
      %p165 = por %p163, %p164
      %p166 = scmp.ne.s32.totalorder %s155, %s158
      %p167 = scmp.eq.s32.totalorder %s30, 1
      %p168 = por %p166, %p167
      %p169 = scmp.ne.s32.totalorder %s158, %s159
      %p170 = scmp.eq.s32.totalorder %s30, 0
      %p171 = por %p169, %p170
      %p172 = scmp.ne.s32.totalorder %s158, %s159
      %p173 = scmp.eq.s32.totalorder %s31, 1
      %p174 = por %p172, %p173
      %p176 = scmp.ne.s32.totalorder %s159, %s175
      %p177 = scmp.eq.s32.totalorder %s31, 0
      %p178 = por %p176, %p177
      %p179 = scmp.le.s32.totalorder 1, %s25
      %p180 = scmp.lt.s32.totalorder %s25, 3
      %p181 = pnand %p179, %p180
      %p182 = pneg %p181
      // Predicated region
      $region9: #{tpu_custom_call.1} parent=5 // pred_check
        _
      $region10: #{tpu_custom_call.1} parent=5 // pred_check_branch
        %184 = sbr.rel (%p181) target = $region12
      $region11: #{tpu_custom_call.1} parent=5 // pred_region
        %s185 = ssub.s32 %s25, 1
        // Predicated region
        $region13: #{tpu_custom_call.1} parent=11 // pred_check
          %p186 = pneg %p98
        $region14: #{tpu_custom_call.1} parent=11 // pred_check_branch
          %188 = sbr.rel (%p186) target = $region16
        $region15: #{tpu_custom_call.1} parent=11 // pred_region
          %s190 = ssub.s32 6144, 6144
          %191 = vsyncadd [#allocation6], %s190
          %s192 = sshll.u32 [#allocation7], 4
          %s193 = int_to_ptr.vmem [resolvable:$true] %s192
          %198 = dma.hbm_to_vmem [thread:$0]  %s2, 6144, %s193, [#allocation6], 64, 64, 4
        $region16: #{tpu_custom_call.1} parent=11 // pred_fallthru
          _
        // Predicated region
        $region17: #{tpu_custom_call.1} parent=11 // pred_check
          %p199 = pneg %p119
        $region18: #{tpu_custom_call.1} parent=11 // pred_check_branch
          %201 = sbr.rel (%p199) target = $region20
        $region19: #{tpu_custom_call.1} parent=11 // pred_region
          %s203 = ssub.s32 96, 96
          %204 = vsyncadd [#allocation9], %s203
          %s205 = sshll.u32 [#allocation8], 4
          %s206 = int_to_ptr.vmem [resolvable:$true] %s205
          %211 = dma.hbm_to_vmem [thread:$0]  %s3, 96, %s206, [#allocation9], 16, 16, 1
        $region20: #{tpu_custom_call.1} parent=11 // pred_fallthru
          _
      $region12: #{tpu_custom_call.1} parent=5 // pred_fallthru
        _
      %p212 = scmp.lt.s32.totalorder %s25, 2
      // Predicated region
      $region21: #{tpu_custom_call.1} parent=5 // pred_check
        %p213 = pneg %p212
      $region22: #{tpu_custom_call.1} parent=5 // pred_check_branch
        %215 = sbr.rel (%p213) target = $region24
      $region23: #{tpu_custom_call.1} parent=5 // pred_region
        // Predicated region
        $region25: #{tpu_custom_call.1} parent=23 // pred_check
          %p216 = pneg %p45
        $region26: #{tpu_custom_call.1} parent=23 // pred_check_branch
          %218 = sbr.rel (%p216) target = $region28
        $region27: #{tpu_custom_call.1} parent=23 // pred_region
          %s219 = sand.u32 %s35, 1
          %s220 = scalar_lea.sflag [#allocation3], %s219
          %s221 = sand.u32 %s35, 1
          %s222 = smul.addr %s221, 8
          %s223 = scalar_lea.vmem [#allocation2], %s222
          %s225 = ssub.s32 128, 128
          %226 = vsyncadd %s220, %s225
          %s227 = smul.addr %s25, 128
          %s228 = scalar_lea.hbm %s0, %s227
          %s230 = sshll.u32 %s223, 4
          %s231 = int_to_ptr.vmem [resolvable:$true] %s230
          %233 = dma.hbm_to_vmem [thread:$0]  %s228, 128, %s231, %s220
        $region28: #{tpu_custom_call.1} parent=23 // pred_fallthru
          _
        // Predicated region
        $region29: #{tpu_custom_call.1} parent=23 // pred_check
          %p234 = pneg %p71
        $region30: #{tpu_custom_call.1} parent=23 // pred_check_branch
          %236 = sbr.rel (%p234) target = $region32
        $region31: #{tpu_custom_call.1} parent=23 // pred_region
          %s237 = sand.u32 %s25, 1
          %s238 = scalar_lea.sflag [#allocation6], %s237
          %s239 = sand.u32 %s61, 1
          %s240 = smul.addr %s239, 8
          %s241 = scalar_lea.vmem [#allocation5], %s240
          %s243 = ssub.s32 128, 128
          %244 = vsyncadd %s238, %s243
          %s245 = smul.addr %s25, 128
          %s246 = scalar_lea.hbm %s1, %s245
          %s248 = sshll.u32 %s241, 4
          %s249 = int_to_ptr.vmem [resolvable:$true] %s248
          %251 = dma.hbm_to_vmem [thread:$0]  %s246, 128, %s249, %s238
        $region32: #{tpu_custom_call.1} parent=23 // pred_fallthru
          _
      $region24: #{tpu_custom_call.1} parent=5 // pred_fallthru
        _
      %p252 = scmp.le.s32.totalorder 1, %s25
      %p253 = scmp.lt.s32.totalorder %s25, 3
      %p254 = pnand %p252, %p253
      %p255 = pneg %p254
      // Predicated region
      $region33: #{tpu_custom_call.1} parent=5 // pred_check
        _
      $region34: #{tpu_custom_call.1} parent=5 // pred_check_branch
        %257 = sbr.rel (%p254) target = $region36
      $region35: #{tpu_custom_call.1} parent=5 // pred_region
        %s258 = ssub.s32 %s25, 1
        %s259 = sand.u32 %s38, 1
        %s260 = scalar_lea.sflag [#allocation3], %s259
        %s261 = sand.u32 %s38, 1
        %s262 = smul.addr %s261, 8
        %s263 = scalar_lea.vmem [#allocation2], %s262
        // Predicated region
        $region37: #{tpu_custom_call.1} parent=35 // pred_check
          %p264 = pneg %p51
        $region38: #{tpu_custom_call.1} parent=35 // pred_check_branch
          %266 = sbr.rel (%p264) target = $region40
        $region39: #{tpu_custom_call.1} parent=35 // pred_region
          %267 = dma.done %s260, 128
        $region40: #{tpu_custom_call.1} parent=35 // pred_fallthru
          _
        %s268 = sand.u32 %s30, 1
        %s269 = scalar_lea.sflag [#allocation6], %s268
        %s270 = sand.u32 %s64, 1
        %s271 = smul.addr %s270, 8
        %s272 = scalar_lea.vmem [#allocation5], %s271
        // Predicated region
        $region41: #{tpu_custom_call.1} parent=35 // pred_check
          %p273 = pneg %p77
        $region42: #{tpu_custom_call.1} parent=35 // pred_check_branch
          %275 = sbr.rel (%p273) target = $region44
        $region43: #{tpu_custom_call.1} parent=35 // pred_region
          %276 = dma.done %s269, 128
        $region44: #{tpu_custom_call.1} parent=35 // pred_fallthru
          _
        // Predicated region
        $region45: #{tpu_custom_call.1} parent=35 // pred_check
          %p277 = pneg %p98
        $region46: #{tpu_custom_call.1} parent=35 // pred_check_branch
          %279 = sbr.rel (%p277) target = $region48
        $region47: #{tpu_custom_call.1} parent=35 // pred_region
          %280 = dma.done [#allocation6], 6144
        $region48: #{tpu_custom_call.1} parent=35 // pred_fallthru
          _
        // Predicated region
        $region49: #{tpu_custom_call.1} parent=35 // pred_check
          %p281 = pneg %p119
        $region50: #{tpu_custom_call.1} parent=35 // pred_check_branch
          %283 = sbr.rel (%p281) target = $region52
        $region51: #{tpu_custom_call.1} parent=35 // pred_region
          %284 = dma.done [#allocation9], 96
        $region52: #{tpu_custom_call.1} parent=35 // pred_fallthru
          _
        %s285 = sand.u32 %s38, 1
        %s286 = scalar_lea.sflag [#allocation3], %s285
        %s287 = sand.u32 %s38, 1
        %s288 = smul.addr %s287, 8
        %s289 = scalar_lea.vmem [#allocation2], %s288
        %p290 = pneg %p51
        %p291 = pneg %p48
        %s292 = sand.u32 %s30, 1
        %s293 = scalar_lea.sflag [#allocation6], %s292
        %s294 = sand.u32 %s64, 1
        %s295 = smul.addr %s294, 8
        %s296 = scalar_lea.vmem [#allocation5], %s295
        %p297 = pneg %p77
        %p298 = pneg %p74
        %p299 = pneg %p98
        %p300 = pneg %p95
        %p301 = pneg %p119
        %p302 = pneg %p116
        %p303 = pneg %p145
        %p304 = pneg %p142
        %s305 = sand.u32 %s132, 1
        %s306 = scalar_lea.sflag [#allocation4], %s305
        %s307 = sand.u32 %s132, 1
        %s308 = smul.addr %s307, 8
        %s309 = scalar_lea.vmem [#allocation10], %s308
        %p310 = pneg %p171
        %p311 = pneg %p168
        %s312 = sand.u32 %s158, 1
        %s313 = scalar_lea.sflag [#allocation12], %s312
        %s314 = sand.u32 %s158, 1
        %s315 = smul.addr %s314, 8
        %s316 = scalar_lea.vmem [#allocation11], %s315
        %v318 = vld [vmem:[%s263] sm:$0xff]
        %v319 = vpack.c.bf16 %v318, %v318
        %v320 = vld [vmem:[#allocation7] sm:$0xf]
        %v321 = vld [vmem:[#allocation7 + $0x4] sm:$0xf]
        %v322 = vld [vmem:[#allocation7 + $0x8] sm:$0xf]
        %v323 = vld [vmem:[#allocation7 + $0xc] sm:$0xf]
        %v324 = vld [vmem:[#allocation7 + $0x10] sm:$0xf]
        %v325 = vld [vmem:[#allocation7 + $0x14] sm:$0xf]
        %v326 = vld [vmem:[#allocation7 + $0x18] sm:$0xf]
        %v327 = vld [vmem:[#allocation7 + $0x1c] sm:$0xf]
        %v328 = vld [vmem:[#allocation7 + $0x20] sm:$0xf]
        %v329 = vld [vmem:[#allocation7 + $0x24] sm:$0xf]
        %v330 = vld [vmem:[#allocation7 + $0x28] sm:$0xf]
        %v331 = vld [vmem:[#allocation7 + $0x2c] sm:$0xf]
        %v332 = vld [vmem:[#allocation7 + $0x30] sm:$0xf]
        %v333 = vld [vmem:[#allocation7 + $0x34] sm:$0xf]
        %v334 = vld [vmem:[#allocation7 + $0x38] sm:$0xf]
        %v335 = vld [vmem:[#allocation7 + $0x3c] sm:$0xf]
        %v336 = vld [vmem:[#allocation8] sm:$0x1]
        %v338 = vlaneseq
        %v339 = vshrl.u32 %v338, 7
        %v340 = vsub.s32 0, %v339
        %v341 = vrot.slane %v336, %v340
        %v359 = vunpack.c.l.b16 %v320
        %v360 = vunpack.c.l.b16 %v321
        %v361 = vunpack.c.l.b16 %v322
        %v362 = vunpack.c.l.b16 %v323
        %v363 = vunpack.c.l.b16 %v324
        %v364 = vunpack.c.l.b16 %v325
        %v365 = vunpack.c.l.b16 %v326
        %v366 = vunpack.c.l.b16 %v327
        %v367 = vunpack.c.l.b16 %v328
        %v368 = vunpack.c.l.b16 %v329
        %v369 = vunpack.c.l.b16 %v330
        %v370 = vunpack.c.l.b16 %v331
        %v371 = vunpack.c.l.b16 %v332
        %v372 = vunpack.c.l.b16 %v333
        %v373 = vunpack.c.l.b16 %v334
        %v374 = vunpack.c.l.b16 %v335
        %v375 = vpack.c.b16 %v360, %v359
        %v376 = vpack.c.b16 %v362, %v361
        %v377 = vpack.c.b16 %v364, %v363
        %v378 = vpack.c.b16 %v366, %v365
        %v379 = vpack.c.b16 %v368, %v367
        %v380 = vpack.c.b16 %v370, %v369
        %v381 = vpack.c.b16 %v372, %v371
        %v382 = vpack.c.b16 %v374, %v373
        %391 = vmatprep.subr.bf16.mxu0 0
        %392 = vmatpush1.bf16.msra.mxu0 %v382
        %393 = vmatprep.subr.bf16.mxu0 0
        %394 = vmatpush1.bf16.msra.mxu0 %v381
        %395 = vmatprep.subr.bf16.mxu0 0
        %396 = vmatpush1.bf16.msra.mxu0 %v380
        %397 = vmatprep.subr.bf16.mxu0 0
        %398 = vmatpush1.bf16.msra.mxu0 %v379
        %399 = vmatprep.subr.bf16.mxu0 0
        %400 = vmatpush1.bf16.msra.mxu0 %v378
        %401 = vmatprep.subr.bf16.mxu0 0
        %402 = vmatpush1.bf16.msra.mxu0 %v377
        %403 = vmatprep.subr.bf16.mxu0 0
        %404 = vmatpush1.bf16.msra.mxu0 %v376
        %405 = vmatprep.subr.bf16.mxu0 0
        %406 = vmatpush1.bf16.msra.mxu0 %v375
        %407 = vmatprep.subr.bf16.mxu0 0
        %408 = vmatpush2.bf16.msra.mxu0 0
        %409 = vmatprep.subr.bf16.mxu0 0
        %410 = vmatpush2.bf16.msra.mxu0 0
        %411 = vmatprep.subr.bf16.mxu0 0
        %412 = vmatpush2.bf16.msra.mxu0 0
        %413 = vmatprep.subr.bf16.mxu0 0
        %414 = vmatpush2.bf16.msra.mxu0 0
        %415 = vmatprep.subr.bf16.mxu0 0
        %416 = vmatpush2.bf16.msra.mxu0 0
        %417 = vmatprep.subr.bf16.mxu0 0
        %418 = vmatpush2.bf16.msra.mxu0 0
        %419 = vmatprep.subr.bf16.mxu0 0
        %420 = vmatpush2.bf16.msra.mxu0 0
        %421 = vmatprep.subr.bf16.mxu0 0
        %422 = vmatpush2.bf16.msra.mxu0 0
        %423 = vmatprep.mubr.bf16.mxu0 0
        %424 = vmatmul.mubr.bf16.gmra.mxu0 %v319
        %v425 = vpop.f32.mrf.mxu0
        %v426 = vadd.f32 %v341, %v425
        %v427 = vpop.f32.mrf.mxu0
        %v428 = vpop.f32.mrf.mxu0
        %v429 = vpop.f32.mrf.mxu0
        %430 = vdwg.mxu0
        %v431 = vpack.c.bf16 %v426, %v426
        %s432 = scalar_lea.vmem [#allocation7], 64
        %v433 = vld [vmem:[%s432] sm:$0xf]
        %v434 = vld [vmem:[%s432 + $0x4] sm:$0xf]
        %v435 = vld [vmem:[%s432 + $0x8] sm:$0xf]
        %v436 = vld [vmem:[%s432 + $0xc] sm:$0xf]
        %v437 = vld [vmem:[%s432 + $0x10] sm:$0xf]
        %v438 = vld [vmem:[%s432 + $0x14] sm:$0xf]
        %v439 = vld [vmem:[%s432 + $0x18] sm:$0xf]
        %v440 = vld [vmem:[%s432 + $0x1c] sm:$0xf]
        %v441 = vld [vmem:[%s432 + $0x20] sm:$0xf]
        %v442 = vld [vmem:[%s432 + $0x24] sm:$0xf]
        %v443 = vld [vmem:[%s432 + $0x28] sm:$0xf]
        %v444 = vld [vmem:[%s432 + $0x2c] sm:$0xf]
        %v445 = vld [vmem:[%s432 + $0x30] sm:$0xf]
        %v446 = vld [vmem:[%s432 + $0x34] sm:$0xf]
        %v447 = vld [vmem:[%s432 + $0x38] sm:$0xf]
        %v448 = vld [vmem:[%s432 + $0x3c] sm:$0xf]
        %s449 = scalar_lea.vmem [#allocation8], 1
        %v450 = vld [vmem:[%s449] sm:$0x1]
        %v452 = vlaneseq
        %v453 = vshrl.u32 %v452, 7
        %v454 = vsub.s32 0, %v453
        %v455 = vrot.slane %v450, %v454
        %v473 = vunpack.c.l.b16 %v433
        %v474 = vunpack.c.l.b16 %v434
        %v475 = vunpack.c.l.b16 %v435
        %v476 = vunpack.c.l.b16 %v436
        %v477 = vunpack.c.l.b16 %v437
        %v478 = vunpack.c.l.b16 %v438
        %v479 = vunpack.c.l.b16 %v439
        %v480 = vunpack.c.l.b16 %v440
        %v481 = vunpack.c.l.b16 %v441
        %v482 = vunpack.c.l.b16 %v442
        %v483 = vunpack.c.l.b16 %v443
        %v484 = vunpack.c.l.b16 %v444
        %v485 = vunpack.c.l.b16 %v445
        %v486 = vunpack.c.l.b16 %v446
        %v487 = vunpack.c.l.b16 %v447
        %v488 = vunpack.c.l.b16 %v448
        %v489 = vpack.c.b16 %v474, %v473
        %v490 = vpack.c.b16 %v476, %v475
        %v491 = vpack.c.b16 %v478, %v477
        %v492 = vpack.c.b16 %v480, %v479
        %v493 = vpack.c.b16 %v482, %v481
        %v494 = vpack.c.b16 %v484, %v483
        %v495 = vpack.c.b16 %v486, %v485
        %v496 = vpack.c.b16 %v488, %v487
        %505 = vmatprep.subr.bf16.mxu0 0
        %506 = vmatpush1.bf16.msra.mxu0 %v496
        %507 = vmatprep.subr.bf16.mxu0 0
        %508 = vmatpush1.bf16.msra.mxu0 %v495
        %509 = vmatprep.subr.bf16.mxu0 0
        %510 = vmatpush1.bf16.msra.mxu0 %v494
        %511 = vmatprep.subr.bf16.mxu0 0
        %512 = vmatpush1.bf16.msra.mxu0 %v493
        %513 = vmatprep.subr.bf16.mxu0 0
        %514 = vmatpush1.bf16.msra.mxu0 %v492
        %515 = vmatprep.subr.bf16.mxu0 0
        %516 = vmatpush1.bf16.msra.mxu0 %v491
        %517 = vmatprep.subr.bf16.mxu0 0
        %518 = vmatpush1.bf16.msra.mxu0 %v490
        %519 = vmatprep.subr.bf16.mxu0 0
        %520 = vmatpush1.bf16.msra.mxu0 %v489
        %521 = vmatprep.subr.bf16.mxu0 0
        %522 = vmatpush2.bf16.msra.mxu0 0
        %523 = vmatprep.subr.bf16.mxu0 0
        %524 = vmatpush2.bf16.msra.mxu0 0
        %525 = vmatprep.subr.bf16.mxu0 0
        %526 = vmatpush2.bf16.msra.mxu0 0
        %527 = vmatprep.subr.bf16.mxu0 0
        %528 = vmatpush2.bf16.msra.mxu0 0
        %529 = vmatprep.subr.bf16.mxu0 0
        %530 = vmatpush2.bf16.msra.mxu0 0
        %531 = vmatprep.subr.bf16.mxu0 0
        %532 = vmatpush2.bf16.msra.mxu0 0
        %533 = vmatprep.subr.bf16.mxu0 0
        %534 = vmatpush2.bf16.msra.mxu0 0
        %535 = vmatprep.subr.bf16.mxu0 0
        %536 = vmatpush2.bf16.msra.mxu0 0
        %537 = vmatprep.mubr.bf16.mxu0 0
        %538 = vmatmul.mubr.bf16.gmra.mxu0 %v431
        %v539 = vpop.f32.mrf.mxu0
        %v540 = vadd.f32 %v455, %v539
        %v541 = vpop.f32.mrf.mxu0
        %v542 = vpop.f32.mrf.mxu0
        %v543 = vpop.f32.mrf.mxu0
        %544 = vdwg.mxu0
        %v545 = vpack.c.bf16 %v540, %v540
        %s546 = scalar_lea.vmem [#allocation7], 128
        %v547 = vld [vmem:[%s546] sm:$0xf]
        %v548 = vld [vmem:[%s546 + $0x4] sm:$0xf]
        %v549 = vld [vmem:[%s546 + $0x8] sm:$0xf]
        %v550 = vld [vmem:[%s546 + $0xc] sm:$0xf]
        %v551 = vld [vmem:[%s546 + $0x10] sm:$0xf]
        %v552 = vld [vmem:[%s546 + $0x14] sm:$0xf]
        %v553 = vld [vmem:[%s546 + $0x18] sm:$0xf]
        %v554 = vld [vmem:[%s546 + $0x1c] sm:$0xf]
        %v555 = vld [vmem:[%s546 + $0x20] sm:$0xf]
        %v556 = vld [vmem:[%s546 + $0x24] sm:$0xf]
        %v557 = vld [vmem:[%s546 + $0x28] sm:$0xf]
        %v558 = vld [vmem:[%s546 + $0x2c] sm:$0xf]
        %v559 = vld [vmem:[%s546 + $0x30] sm:$0xf]
        %v560 = vld [vmem:[%s546 + $0x34] sm:$0xf]
        %v561 = vld [vmem:[%s546 + $0x38] sm:$0xf]
        %v562 = vld [vmem:[%s546 + $0x3c] sm:$0xf]
        %s563 = scalar_lea.vmem [#allocation8], 2
        %v564 = vld [vmem:[%s563] sm:$0x1]
        %v566 = vlaneseq
        %v567 = vshrl.u32 %v566, 7
        %v568 = vsub.s32 0, %v567
        %v569 = vrot.slane %v564, %v568
        %v587 = vunpack.c.l.b16 %v547
        %v588 = vunpack.c.l.b16 %v548
        %v589 = vunpack.c.l.b16 %v549
        %v590 = vunpack.c.l.b16 %v550
        %v591 = vunpack.c.l.b16 %v551
        %v592 = vunpack.c.l.b16 %v552
        %v593 = vunpack.c.l.b16 %v553
        %v594 = vunpack.c.l.b16 %v554
        %v595 = vunpack.c.l.b16 %v555
        %v596 = vunpack.c.l.b16 %v556
        %v597 = vunpack.c.l.b16 %v557
        %v598 = vunpack.c.l.b16 %v558
        %v599 = vunpack.c.l.b16 %v559
        %v600 = vunpack.c.l.b16 %v560
        %v601 = vunpack.c.l.b16 %v561
        %v602 = vunpack.c.l.b16 %v562
        %v603 = vpack.c.b16 %v588, %v587
        %v604 = vpack.c.b16 %v590, %v589
        %v605 = vpack.c.b16 %v592, %v591
        %v606 = vpack.c.b16 %v594, %v593
        %v607 = vpack.c.b16 %v596, %v595
        %v608 = vpack.c.b16 %v598, %v597
        %v609 = vpack.c.b16 %v600, %v599
        %v610 = vpack.c.b16 %v602, %v601
        %619 = vmatprep.subr.bf16.mxu0 0
        %620 = vmatpush1.bf16.msra.mxu0 %v610
        %621 = vmatprep.subr.bf16.mxu0 0
        %622 = vmatpush1.bf16.msra.mxu0 %v609
        %623 = vmatprep.subr.bf16.mxu0 0
        %624 = vmatpush1.bf16.msra.mxu0 %v608
        %625 = vmatprep.subr.bf16.mxu0 0
        %626 = vmatpush1.bf16.msra.mxu0 %v607
        %627 = vmatprep.subr.bf16.mxu0 0
        %628 = vmatpush1.bf16.msra.mxu0 %v606
        %629 = vmatprep.subr.bf16.mxu0 0
        %630 = vmatpush1.bf16.msra.mxu0 %v605
        %631 = vmatprep.subr.bf16.mxu0 0
        %632 = vmatpush1.bf16.msra.mxu0 %v604
        %633 = vmatprep.subr.bf16.mxu0 0
        %634 = vmatpush1.bf16.msra.mxu0 %v603
        %635 = vmatprep.subr.bf16.mxu0 0
        %636 = vmatpush2.bf16.msra.mxu0 0
        %637 = vmatprep.subr.bf16.mxu0 0
        %638 = vmatpush2.bf16.msra.mxu0 0
        %639 = vmatprep.subr.bf16.mxu0 0
        %640 = vmatpush2.bf16.msra.mxu0 0
        %641 = vmatprep.subr.bf16.mxu0 0
        %642 = vmatpush2.bf16.msra.mxu0 0
        %643 = vmatprep.subr.bf16.mxu0 0
        %644 = vmatpush2.bf16.msra.mxu0 0
        %645 = vmatprep.subr.bf16.mxu0 0
        %646 = vmatpush2.bf16.msra.mxu0 0
        %647 = vmatprep.subr.bf16.mxu0 0
        %648 = vmatpush2.bf16.msra.mxu0 0
        %649 = vmatprep.subr.bf16.mxu0 0
        %650 = vmatpush2.bf16.msra.mxu0 0
        %651 = vmatprep.mubr.bf16.mxu0 0
        %652 = vmatmul.mubr.bf16.gmra.mxu0 %v545
        %v653 = vpop.f32.mrf.mxu0
        %v654 = vadd.f32 %v569, %v653
        %v655 = vpop.f32.mrf.mxu0
        %v656 = vpop.f32.mrf.mxu0
        %v657 = vpop.f32.mrf.mxu0
        %658 = vdwg.mxu0
        %v659 = vadd.f32 %v540, %v654
        %v660 = vpack.c.bf16 %v659, %v659
        %s661 = scalar_lea.vmem [#allocation7], 192
        %v662 = vld [vmem:[%s661] sm:$0xf]
        %v663 = vld [vmem:[%s661 + $0x4] sm:$0xf]
        %v664 = vld [vmem:[%s661 + $0x8] sm:$0xf]
        %v665 = vld [vmem:[%s661 + $0xc] sm:$0xf]
        %v666 = vld [vmem:[%s661 + $0x10] sm:$0xf]
        %v667 = vld [vmem:[%s661 + $0x14] sm:$0xf]
        %v668 = vld [vmem:[%s661 + $0x18] sm:$0xf]
        %v669 = vld [vmem:[%s661 + $0x1c] sm:$0xf]
        %v670 = vld [vmem:[%s661 + $0x20] sm:$0xf]
        %v671 = vld [vmem:[%s661 + $0x24] sm:$0xf]
        %v672 = vld [vmem:[%s661 + $0x28] sm:$0xf]
        %v673 = vld [vmem:[%s661 + $0x2c] sm:$0xf]
        %v674 = vld [vmem:[%s661 + $0x30] sm:$0xf]
        %v675 = vld [vmem:[%s661 + $0x34] sm:$0xf]
        %v676 = vld [vmem:[%s661 + $0x38] sm:$0xf]
        %v677 = vld [vmem:[%s661 + $0x3c] sm:$0xf]
        %s678 = scalar_lea.vmem [#allocation8], 3
        %v679 = vld [vmem:[%s678] sm:$0x1]
        %v681 = vlaneseq
        %v682 = vshrl.u32 %v681, 7
        %v683 = vsub.s32 0, %v682
        %v684 = vrot.slane %v679, %v683
        %v702 = vunpack.c.l.b16 %v662
        %v703 = vunpack.c.l.b16 %v663
        %v704 = vunpack.c.l.b16 %v664
        %v705 = vunpack.c.l.b16 %v665
        %v706 = vunpack.c.l.b16 %v666
        %v707 = vunpack.c.l.b16 %v667
        %v708 = vunpack.c.l.b16 %v668
        %v709 = vunpack.c.l.b16 %v669
        %v710 = vunpack.c.l.b16 %v670
        %v711 = vunpack.c.l.b16 %v671
        %v712 = vunpack.c.l.b16 %v672
        %v713 = vunpack.c.l.b16 %v673
        %v714 = vunpack.c.l.b16 %v674
        %v715 = vunpack.c.l.b16 %v675
        %v716 = vunpack.c.l.b16 %v676
        %v717 = vunpack.c.l.b16 %v677
        %v718 = vpack.c.b16 %v703, %v702
        %v719 = vpack.c.b16 %v705, %v704
        %v720 = vpack.c.b16 %v707, %v706
        %v721 = vpack.c.b16 %v709, %v708
        %v722 = vpack.c.b16 %v711, %v710
        %v723 = vpack.c.b16 %v713, %v712
        %v724 = vpack.c.b16 %v715, %v714
        %v725 = vpack.c.b16 %v717, %v716
        %734 = vmatprep.subr.bf16.mxu0 0
        %735 = vmatpush1.bf16.msra.mxu0 %v725
        %736 = vmatprep.subr.bf16.mxu0 0
        %737 = vmatpush1.bf16.msra.mxu0 %v724
        %738 = vmatprep.subr.bf16.mxu0 0
        %739 = vmatpush1.bf16.msra.mxu0 %v723
        %740 = vmatprep.subr.bf16.mxu0 0
        %741 = vmatpush1.bf16.msra.mxu0 %v722
        %742 = vmatprep.subr.bf16.mxu0 0
        %743 = vmatpush1.bf16.msra.mxu0 %v721
        %744 = vmatprep.subr.bf16.mxu0 0
        %745 = vmatpush1.bf16.msra.mxu0 %v720
        %746 = vmatprep.subr.bf16.mxu0 0
        %747 = vmatpush1.bf16.msra.mxu0 %v719
        %748 = vmatprep.subr.bf16.mxu0 0
        %749 = vmatpush1.bf16.msra.mxu0 %v718
        %750 = vmatprep.subr.bf16.mxu0 0
        %751 = vmatpush2.bf16.msra.mxu0 0
        %752 = vmatprep.subr.bf16.mxu0 0
        %753 = vmatpush2.bf16.msra.mxu0 0
        %754 = vmatprep.subr.bf16.mxu0 0
        %755 = vmatpush2.bf16.msra.mxu0 0
        %756 = vmatprep.subr.bf16.mxu0 0
        %757 = vmatpush2.bf16.msra.mxu0 0
        %758 = vmatprep.subr.bf16.mxu0 0
        %759 = vmatpush2.bf16.msra.mxu0 0
        %760 = vmatprep.subr.bf16.mxu0 0
        %761 = vmatpush2.bf16.msra.mxu0 0
        %762 = vmatprep.subr.bf16.mxu0 0
        %763 = vmatpush2.bf16.msra.mxu0 0
        %764 = vmatprep.subr.bf16.mxu0 0
        %765 = vmatpush2.bf16.msra.mxu0 0
        %766 = vmatprep.mubr.bf16.mxu0 0
        %767 = vmatmul.mubr.bf16.gmra.mxu0 %v660
        %v768 = vpop.f32.mrf.mxu0
        %v769 = vadd.f32 %v684, %v768
        %v770 = vpop.f32.mrf.mxu0
        %v771 = vpop.f32.mrf.mxu0
        %v772 = vpop.f32.mrf.mxu0
        %773 = vdwg.mxu0
        %v774 = vadd.f32 %v659, %v769
        %v775 = vpack.c.bf16 %v774, %v774
        %s776 = scalar_lea.vmem [#allocation7], 256
        %v777 = vld [vmem:[%s776] sm:$0xf]
        %v778 = vld [vmem:[%s776 + $0x4] sm:$0xf]
        %v779 = vld [vmem:[%s776 + $0x8] sm:$0xf]
        %v780 = vld [vmem:[%s776 + $0xc] sm:$0xf]
        %v781 = vld [vmem:[%s776 + $0x10] sm:$0xf]
        %v782 = vld [vmem:[%s776 + $0x14] sm:$0xf]
        %v783 = vld [vmem:[%s776 + $0x18] sm:$0xf]
        %v784 = vld [vmem:[%s776 + $0x1c] sm:$0xf]
        %v785 = vld [vmem:[%s776 + $0x20] sm:$0xf]
        %v786 = vld [vmem:[%s776 + $0x24] sm:$0xf]
        %v787 = vld [vmem:[%s776 + $0x28] sm:$0xf]
        %v788 = vld [vmem:[%s776 + $0x2c] sm:$0xf]
        %v789 = vld [vmem:[%s776 + $0x30] sm:$0xf]
        %v790 = vld [vmem:[%s776 + $0x34] sm:$0xf]
        %v791 = vld [vmem:[%s776 + $0x38] sm:$0xf]
        %v792 = vld [vmem:[%s776 + $0x3c] sm:$0xf]
        %s793 = scalar_lea.vmem [#allocation8], 4
        %v794 = vld [vmem:[%s793] sm:$0x1]
        %v796 = vlaneseq
        %v797 = vshrl.u32 %v796, 7
        %v798 = vsub.s32 0, %v797
        %v799 = vrot.slane %v794, %v798
        %v817 = vunpack.c.l.b16 %v777
        %v818 = vunpack.c.l.b16 %v778
        %v819 = vunpack.c.l.b16 %v779
        %v820 = vunpack.c.l.b16 %v780
        %v821 = vunpack.c.l.b16 %v781
        %v822 = vunpack.c.l.b16 %v782
        %v823 = vunpack.c.l.b16 %v783
        %v824 = vunpack.c.l.b16 %v784
        %v825 = vunpack.c.l.b16 %v785
        %v826 = vunpack.c.l.b16 %v786
        %v827 = vunpack.c.l.b16 %v787
        %v828 = vunpack.c.l.b16 %v788
        %v829 = vunpack.c.l.b16 %v789
        %v830 = vunpack.c.l.b16 %v790
        %v831 = vunpack.c.l.b16 %v791
        %v832 = vunpack.c.l.b16 %v792
        %v833 = vpack.c.b16 %v818, %v817
        %v834 = vpack.c.b16 %v820, %v819
        %v835 = vpack.c.b16 %v822, %v821
        %v836 = vpack.c.b16 %v824, %v823
        %v837 = vpack.c.b16 %v826, %v825
        %v838 = vpack.c.b16 %v828, %v827
        %v839 = vpack.c.b16 %v830, %v829
        %v840 = vpack.c.b16 %v832, %v831
        %849 = vmatprep.subr.bf16.mxu0 0
        %850 = vmatpush1.bf16.msra.mxu0 %v840
        %851 = vmatprep.subr.bf16.mxu0 0
        %852 = vmatpush1.bf16.msra.mxu0 %v839
        %853 = vmatprep.subr.bf16.mxu0 0
        %854 = vmatpush1.bf16.msra.mxu0 %v838
        %855 = vmatprep.subr.bf16.mxu0 0
        %856 = vmatpush1.bf16.msra.mxu0 %v837
        %857 = vmatprep.subr.bf16.mxu0 0
        %858 = vmatpush1.bf16.msra.mxu0 %v836
        %859 = vmatprep.subr.bf16.mxu0 0
        %860 = vmatpush1.bf16.msra.mxu0 %v835
        %861 = vmatprep.subr.bf16.mxu0 0
        %862 = vmatpush1.bf16.msra.mxu0 %v834
        %863 = vmatprep.subr.bf16.mxu0 0
        %864 = vmatpush1.bf16.msra.mxu0 %v833
        %865 = vmatprep.subr.bf16.mxu0 0
        %866 = vmatpush2.bf16.msra.mxu0 0
        %867 = vmatprep.subr.bf16.mxu0 0
        %868 = vmatpush2.bf16.msra.mxu0 0
        %869 = vmatprep.subr.bf16.mxu0 0
        %870 = vmatpush2.bf16.msra.mxu0 0
        %871 = vmatprep.subr.bf16.mxu0 0
        %872 = vmatpush2.bf16.msra.mxu0 0
        %873 = vmatprep.subr.bf16.mxu0 0
        %874 = vmatpush2.bf16.msra.mxu0 0
        %875 = vmatprep.subr.bf16.mxu0 0
        %876 = vmatpush2.bf16.msra.mxu0 0
        %877 = vmatprep.subr.bf16.mxu0 0
        %878 = vmatpush2.bf16.msra.mxu0 0
        %879 = vmatprep.subr.bf16.mxu0 0
        %880 = vmatpush2.bf16.msra.mxu0 0
        %881 = vmatprep.mubr.bf16.mxu0 0
        %882 = vmatmul.mubr.bf16.gmra.mxu0 %v775
        %v883 = vpop.f32.mrf.mxu0
        %v884 = vadd.f32 %v799, %v883
        %v885 = vpop.f32.mrf.mxu0
        %v886 = vpop.f32.mrf.mxu0
        %v887 = vpop.f32.mrf.mxu0
        %888 = vdwg.mxu0
        %v889 = vadd.f32 %v774, %v884
        %v890 = vpack.c.bf16 %v889, %v889
        %s891 = scalar_lea.vmem [#allocation7], 320
        %v892 = vld [vmem:[%s891] sm:$0xf]
        %v893 = vld [vmem:[%s891 + $0x4] sm:$0xf]
        %v894 = vld [vmem:[%s891 + $0x8] sm:$0xf]
        %v895 = vld [vmem:[%s891 + $0xc] sm:$0xf]
        %v896 = vld [vmem:[%s891 + $0x10] sm:$0xf]
        %v897 = vld [vmem:[%s891 + $0x14] sm:$0xf]
        %v898 = vld [vmem:[%s891 + $0x18] sm:$0xf]
        %v899 = vld [vmem:[%s891 + $0x1c] sm:$0xf]
        %v900 = vld [vmem:[%s891 + $0x20] sm:$0xf]
        %v901 = vld [vmem:[%s891 + $0x24] sm:$0xf]
        %v902 = vld [vmem:[%s891 + $0x28] sm:$0xf]
        %v903 = vld [vmem:[%s891 + $0x2c] sm:$0xf]
        %v904 = vld [vmem:[%s891 + $0x30] sm:$0xf]
        %v905 = vld [vmem:[%s891 + $0x34] sm:$0xf]
        %v906 = vld [vmem:[%s891 + $0x38] sm:$0xf]
        %v907 = vld [vmem:[%s891 + $0x3c] sm:$0xf]
        %s908 = scalar_lea.vmem [#allocation8], 5
        %v909 = vld [vmem:[%s908] sm:$0x1]
        %v911 = vlaneseq
        %v912 = vshrl.u32 %v911, 7
        %v913 = vsub.s32 0, %v912
        %v914 = vrot.slane %v909, %v913
        %v932 = vunpack.c.l.b16 %v892
        %v933 = vunpack.c.l.b16 %v893
        %v934 = vunpack.c.l.b16 %v894
        %v935 = vunpack.c.l.b16 %v895
        %v936 = vunpack.c.l.b16 %v896
        %v937 = vunpack.c.l.b16 %v897
        %v938 = vunpack.c.l.b16 %v898
        %v939 = vunpack.c.l.b16 %v899
        %v940 = vunpack.c.l.b16 %v900
        %v941 = vunpack.c.l.b16 %v901
        %v942 = vunpack.c.l.b16 %v902
        %v943 = vunpack.c.l.b16 %v903
        %v944 = vunpack.c.l.b16 %v904
        %v945 = vunpack.c.l.b16 %v905
        %v946 = vunpack.c.l.b16 %v906
        %v947 = vunpack.c.l.b16 %v907
        %v948 = vpack.c.b16 %v933, %v932
        %v949 = vpack.c.b16 %v935, %v934
        %v950 = vpack.c.b16 %v937, %v936
        %v951 = vpack.c.b16 %v939, %v938
        %v952 = vpack.c.b16 %v941, %v940
        %v953 = vpack.c.b16 %v943, %v942
        %v954 = vpack.c.b16 %v945, %v944
        %v955 = vpack.c.b16 %v947, %v946
        %964 = vmatprep.subr.bf16.mxu0 0
        %965 = vmatpush1.bf16.msra.mxu0 %v955
        %966 = vmatprep.subr.bf16.mxu0 0
        %967 = vmatpush1.bf16.msra.mxu0 %v954
        %968 = vmatprep.subr.bf16.mxu0 0
        %969 = vmatpush1.bf16.msra.mxu0 %v953
        %970 = vmatprep.subr.bf16.mxu0 0
        %971 = vmatpush1.bf16.msra.mxu0 %v952
        %972 = vmatprep.subr.bf16.mxu0 0
        %973 = vmatpush1.bf16.msra.mxu0 %v951
        %974 = vmatprep.subr.bf16.mxu0 0
        %975 = vmatpush1.bf16.msra.mxu0 %v950
        %976 = vmatprep.subr.bf16.mxu0 0
        %977 = vmatpush1.bf16.msra.mxu0 %v949
        %978 = vmatprep.subr.bf16.mxu0 0
        %979 = vmatpush1.bf16.msra.mxu0 %v948
        %980 = vmatprep.subr.bf16.mxu0 0
        %981 = vmatpush2.bf16.msra.mxu0 0
        %982 = vmatprep.subr.bf16.mxu0 0
        %983 = vmatpush2.bf16.msra.mxu0 0
        %984 = vmatprep.subr.bf16.mxu0 0
        %985 = vmatpush2.bf16.msra.mxu0 0
        %986 = vmatprep.subr.bf16.mxu0 0
        %987 = vmatpush2.bf16.msra.mxu0 0
        %988 = vmatprep.subr.bf16.mxu0 0
        %989 = vmatpush2.bf16.msra.mxu0 0
        %990 = vmatprep.subr.bf16.mxu0 0
        %991 = vmatpush2.bf16.msra.mxu0 0
        %992 = vmatprep.subr.bf16.mxu0 0
        %993 = vmatpush2.bf16.msra.mxu0 0
        %994 = vmatprep.subr.bf16.mxu0 0
        %995 = vmatpush2.bf16.msra.mxu0 0
        %996 = vmatprep.mubr.bf16.mxu0 0
        %997 = vmatmul.mubr.bf16.gmra.mxu0 %v890
        %v998 = vpop.f32.mrf.mxu0
        %v999 = vadd.f32 %v914, %v998
        %v1000 = vpop.f32.mrf.mxu0
        %v1001 = vpop.f32.mrf.mxu0
        %v1002 = vpop.f32.mrf.mxu0
        %1003 = vdwg.mxu0
        %v1004 = vadd.f32 %v889, %v999
        %v1005 = vmul.f32 %v1004, %v1004
        %1006 = vadd.xlane.f32.xlu0 %v1005
        %v1007 = vpop.xlane.xlu0 %1006
        %v1008 = vmax.f32 %v1007, 1e-24
        %v1009 = vrsqrt.pop %v1008
        %v1010 = vmul.f32 %v1004, %v1009
        %1011 = vst [vmem:[%s309] sm:$0xff] %v1010
        %v1012 = vld [vmem:[%s272] sm:$0xff]
        %v1013 = vmul.f32 %v1012, %v1012
        %1014 = vadd.xlane.f32.xlu0 %v1013
        %v1015 = vpop.xlane.xlu0 %1014
        %v1016 = vmax.f32 %v1015, 1e-24
        %v1017 = vrsqrt.pop %v1016
        %v1018 = vmul.f32 %v1012, %v1017
        %1019 = vst [vmem:[%s316] sm:$0xff] %v1018
        %s1020 = sand.u32 %s132, 1
        %s1021 = scalar_lea.sflag [#allocation4], %s1020
        %s1022 = sand.u32 %s132, 1
        %s1023 = smul.addr %s1022, 8
        %s1024 = scalar_lea.vmem [#allocation10], %s1023
        %s1025 = sand.u32 %s158, 1
        %s1026 = scalar_lea.sflag [#allocation12], %s1025
        %s1027 = sand.u32 %s158, 1
        %s1028 = smul.addr %s1027, 8
        %s1029 = scalar_lea.vmem [#allocation11], %s1028
        // Predicated region
        $region53: #{tpu_custom_call.1} parent=35 // pred_check
          %p1030 = pneg %p142
        $region54: #{tpu_custom_call.1} parent=35 // pred_check_branch
          %1032 = sbr.rel (%p1030) target = $region56
        $region55: #{tpu_custom_call.1} parent=35 // pred_region
          %s1034 = ssub.s32 128, 128
          %1035 = vsyncadd %s1021, %s1034
          %s1036 = smul.addr %s30, 128
          %s1037 = scalar_lea.hbm %s4, %s1036
          %s1039 = sshll.u32 %s1024, 4
          %s1040 = int_to_ptr.vmem [resolvable:$true] %s1039
          %1042 = dma.vmem_to_hbm [thread:$0]  %s1040, 128, %s1037, %s1021
        $region56: #{tpu_custom_call.1} parent=35 // pred_fallthru
          _
        // Predicated region
        $region57: #{tpu_custom_call.1} parent=35 // pred_check
          %p1043 = pneg %p168
        $region58: #{tpu_custom_call.1} parent=35 // pred_check_branch
          %1045 = sbr.rel (%p1043) target = $region60
        $region59: #{tpu_custom_call.1} parent=35 // pred_region
          %s1047 = ssub.s32 128, 128
          %1048 = vsyncadd %s1026, %s1047
          %s1049 = smul.addr %s30, 128
          %s1050 = scalar_lea.hbm %s5, %s1049
          %s1052 = sshll.u32 %s1029, 4
          %s1053 = int_to_ptr.vmem [resolvable:$true] %s1052
          %1055 = dma.vmem_to_hbm [thread:$0]  %s1053, 128, %s1050, %s1026
        $region60: #{tpu_custom_call.1} parent=35 // pred_fallthru
          _
      $region36: #{tpu_custom_call.1} parent=5 // pred_fallthru
        _
      %p1056 = scmp.le.s32.totalorder 2, %s25
      // Predicated region
      $region61: #{tpu_custom_call.1} parent=5 // pred_check
        %p1057 = pneg %p1056
      $region62: #{tpu_custom_call.1} parent=5 // pred_check_branch
        %1059 = sbr.rel (%p1057) target = $region64
      $region63: #{tpu_custom_call.1} parent=5 // pred_region
        %s1060 = ssub.s32 %s25, 2
        // Predicated region
        $region65: #{tpu_custom_call.1} parent=63 // pred_check
          %p1061 = pneg %p148
        $region66: #{tpu_custom_call.1} parent=63 // pred_check_branch
          %1063 = sbr.rel (%p1061) target = $region68
        $region67: #{tpu_custom_call.1} parent=63 // pred_region
          %s1064 = sand.u32 %s133, 1
          %s1065 = scalar_lea.sflag [#allocation4], %s1064
          %s1066 = sand.u32 %s133, 1
          %s1067 = smul.addr %s1066, 8
          %s1068 = scalar_lea.vmem [#allocation10], %s1067
          %1069 = dma.done %s1065, 128
        $region68: #{tpu_custom_call.1} parent=63 // pred_fallthru
          _
        // Predicated region
        $region69: #{tpu_custom_call.1} parent=63 // pred_check
          %p1070 = pneg %p174
        $region70: #{tpu_custom_call.1} parent=63 // pred_check_branch
          %1072 = sbr.rel (%p1070) target = $region72
        $region71: #{tpu_custom_call.1} parent=63 // pred_region
          %s1073 = sand.u32 %s159, 1
          %s1074 = scalar_lea.sflag [#allocation12], %s1073
          %s1075 = sand.u32 %s159, 1
          %s1076 = smul.addr %s1075, 8
          %s1077 = scalar_lea.vmem [#allocation11], %s1076
          %1078 = dma.done %s1074, 128
        $region72: #{tpu_custom_call.1} parent=63 // pred_fallthru
          _
      $region64: #{tpu_custom_call.1} parent=5 // pred_fallthru
        _
    $region6: #{tpu_custom_call.1} parent=1 // loop_footer
      %s29 = sadd.s32 1, %s25
    $region7: #{tpu_custom_call.1} parent=1 // loop_footer_branch
      %24 = sbr.rel target = $region3
    $region8: #{tpu_custom_call.1} parent=1 // loop_exit
      _
    %1079 = vsyncpa [#allocation3], 1
    %s1080 = scalar_lea.sflag [#allocation3], 1
    %1081 = vsyncpa %s1080, 1
    %1082 = vsyncpa [#allocation6], 1
    %s1083 = scalar_lea.sflag [#allocation6], 1
    %1084 = vsyncpa %s1083, 1
    %1085 = vsyncpa [#allocation9], 1
    %1086 = vsyncpa [#allocation4], 1
    %s1087 = scalar_lea.sflag [#allocation4], 1
    %1088 = vsyncpa %s1087, 1
    %1089 = vsyncpa [#allocation12], 1
    %s1090 = scalar_lea.sflag [#allocation12], 1
    %1091 = vsyncpa %s1090, 1

</llo_original>
